<compile_context>
chip_gen: v7x
topology: tpu7x:2x2x1
jax: 0.10.0
libtpu: 0.0.40
codegen_flags: <defaults>
</compile_context>

<pallas_src>
import math
from functools import partial

import jax
import jax.numpy as jnp
from jax import lax
from jax.experimental import pallas as pl
from jax.experimental.pallas import tpu as pltpu


# ----------------------------------------------------------------------------
# small helpers
# ----------------------------------------------------------------------------
def _round_up(x, m):
    return ((x + m - 1) // m) * m


def _sublane_multiple(dtype):
    """Packed-sublane multiple for a dtype: 8 (f32) / 16 (bf16) / 32 (int8)."""
    return max(8, 32 // jnp.dtype(dtype).itemsize)


def _num_tensorcores():
    """Best-effort TensorCore count per chip (2 on v7x, 1 on v5e/v6e)."""
    try:
        info = pltpu.get_tpu_info()
        for attr in ("num_tensorcores", "tensorcores_per_chip", "num_cores",
                     "cores_per_chip", "core_count"):
            v = getattr(info, attr, None)
            if v:
                return int(v)
    except Exception:
        pass
    try:
        v = getattr(jax.devices()[0], "num_cores", None)
        if v:
            return int(v)
    except Exception:
        pass
    return 1


def _vmem_cap_bytes():
    try:
        return int(pltpu.get_tpu_info().vmem_capacity_bytes)
    except Exception:
        return 64 * 1024 * 1024            # conservative (v7x per-TC VMEM)


def _vmem_limit(est_bytes):
    """Generation-aware scoped-VMEM limit: ~100 MiB on 128 MiB chips (v5e/v6e),
    ~56 MiB on 64 MiB chips (v7x); always >= the estimated working set."""
    cap = _vmem_cap_bytes()
    hard_cap = (100 << 20) if cap >= (100 << 20) else max(cap - (8 << 20), 32 << 20)
    return int(min(max(2 * est_bytes, est_bytes + (4 << 20), 32 << 20), hard_cap))


def _pick_divisor_tile(total, unit, limit):
    """Largest multiple of `unit` dividing `total` and <= max(limit, unit)."""
    limit = max(limit, unit)
    best, d = unit, unit
    while d <= total:
        if total % d == 0 and d <= limit:
            best = d
        d += unit
    return min(best, total)


def _pick_time_chunk(T):
    """Time-chunk size TS in [8, 32] minimizing padding waste (TS == T if T <= 8)."""
    if T <= 8:
        return T
    best_ts, best_waste = 8, _round_up(T, 8) - T
    for ts in range(9, min(32, T) + 1):
        waste = _round_up(T, ts) - T
        if waste < best_waste or (waste == best_waste and ts > best_ts):
            best_ts, best_waste = ts, waste
    return best_ts


def _prep_weight_t(w, H, H_pad, K_pad, dtype=jnp.bfloat16):
    """Torch-layout (3H, K) gate weight -> transposed, per-gate padded (K_pad, 3*H_pad)."""
    gate, K = w.shape
    assert gate == 3 * H
    w3 = w.reshape(3, H, K)
    w3 = jnp.pad(w3, ((0, 0), (0, H_pad - H), (0, K_pad - K)))
    return jnp.transpose(w3, (2, 0, 1)).reshape(K_pad, 3 * H_pad).astype(dtype)


def _pad_gates_bias(b3, H, H_pad):
    """(3, H) bias -> per-gate padded (1, 3*H_pad) f32."""
    return jnp.pad(b3, ((0, 0), (0, H_pad - H))).reshape(1, 3 * H_pad).astype(jnp.float32)


# ----------------------------------------------------------------------------
# single-buffer (pl.Buffered(1)) resident blocks, with a safe fallback
# ----------------------------------------------------------------------------
_SINGLE_BUFFER_OK = True   # flipped off if this jax build rejects pl.Buffered(1)


def _resident_spec(shape, index_map, single_buffer):
    """BlockSpec for a VMEM-resident operand.  With single_buffer=True the block
    is held in ONE VMEM buffer (pipeline_mode=pl.Buffered(1)) instead of the
    default double buffer — halves resident-weight VMEM (matters on v7x)."""
    if single_buffer:
        return pl.BlockSpec(shape, index_map, pipeline_mode=pl.Buffered(1))
    return pl.BlockSpec(shape, index_map)


def _call_with_single_buffer_fallback(build):
    """build(single_buffer: bool) -> result.  Retries with default (double)
    buffering if single-buffered residents are not supported by this build."""
    global _SINGLE_BUFFER_OK
    if _SINGLE_BUFFER_OK:
        try:
            return build(True)
        except Exception:
            _SINGLE_BUFFER_OK = False
    return build(False)


# ----------------------------------------------------------------------------
# kernel 1: batched input projection over all timesteps (off the serial path)
# ----------------------------------------------------------------------------
def _in_proj_kernel(x_ref, w_ref, b_ref, o_ref):
    acc = jnp.dot(x_ref[...], w_ref[...], preferred_element_type=jnp.float32)
    o_ref[...] = (acc + b_ref[...]).astype(o_ref.dtype)


def _input_projection(x2d, w_t, bias):
    """x2d: (M, I_pad) bf16, w_t: (I_pad, N) bf16, bias: (1, N) f32 -> (M, N) f32."""
    M, I_pad = x2d.shape
    N = w_t.shape[1]
    tm = min(M, 512)
    M_pad = _round_up(M, tm)
    if M_pad != M:
        x2d = jnp.pad(x2d, ((0, M_pad - M), (0, 0)))
    # Tile N so the resident (I_pad, tn) weight block + (tm, tn) output tiles stay
    # well inside the scoped VMEM limit (matters for layer>0 / bidirectional big H).
    tn_limit = min((8 << 20) // (I_pad * 2), (4 << 20) // (tm * 4))
    tn = _pick_divisor_tile(N, 128, tn_limit)

    est = (2 * tm * I_pad * 2           # x tiles (bf16, double buffered)
           + I_pad * tn * 2             # resident weight tile (bf16)
           + 2 * tn * 4                 # bias tile
           + 2 * tm * tn * 4)           # out tiles (f32)

    def build(single_buffer):
        return pl.pallas_call(
            _in_proj_kernel,
            out_shape=jax.ShapeDtypeStruct((M_pad, N), jnp.float32),
            grid_spec=pltpu.PrefetchScalarGridSpec(
                num_scalar_prefetch=0,
                grid=(N // tn, M_pad // tm),      # N tile outer -> weight resident across M tiles
                in_specs=[
                    pl.BlockSpec((tm, I_pad), lambda j, i: (i, 0)),
                    _resident_spec((I_pad, tn), lambda j, i: (0, j), single_buffer),
                    pl.BlockSpec((1, tn), lambda j, i: (0, j)),
                ],
                out_specs=pl.BlockSpec((tm, tn), lambda j, i: (i, j)),
            ),
            compiler_params=pltpu.CompilerParams(
                dimension_semantics=("parallel", "parallel"),
                vmem_limit_bytes=_vmem_limit(est)),
        )(x2d, w_t, bias)

    gi = _call_with_single_buffer_fallback(build)
    return gi[:M]


# ----------------------------------------------------------------------------
# kernel 2: the recurrence — whole sequence in one pallas_call, TS steps / grid step
# ----------------------------------------------------------------------------
def _gru_seq_kernel(rev_ref, gi_ref, whh_ref, bhhn_ref, h0_ref, y_ref, h_scr, *, ts):
    b = pl.program_id(0)
    c = pl.program_id(1)
    Hp = h_scr.shape[1]
    rev = rev_ref[b]        # 0 = forward direction, 1 = reverse direction (time-reversed)

    @pl.when(c == 0)
    def _():
        h_scr[...] = h0_ref[...].astype(jnp.float32)

    w = whh_ref[0]          # (H_pad, 3*H_pad) bf16, VMEM-resident across all time chunks
    b_n = bhhn_ref[0]       # (1, H_pad) f32

    def step(s, h):
        # Chunk-local timestep; reversed within the chunk for the reverse direction.
        s_eff = s + rev * (ts - 1 - 2 * s)
        gi = gi_ref[s_eff]                       # (bb, 3*H_pad) f32; b_ih (+b_hh for r,z) folded in
        # Serial critical path: one (bb, H_pad) x (H_pad, 3*H_pad) bf16 MXU matmul per step.
        gh = jnp.dot(h.astype(w.dtype), w, preferred_element_type=jnp.float32)
        i_r, i_z, i_n = gi[:, :Hp], gi[:, Hp:2 * Hp], gi[:, 2 * Hp:]
        h_r, h_z = gh[:, :Hp], gh[:, Hp:2 * Hp]
        h_n = gh[:, 2 * Hp:] + b_n               # only the n-gate still needs b_hh
        r = jax.nn.sigmoid(i_r + h_r)
        z = jax.nn.sigmoid(i_z + h_z)
        n = jnp.tanh(i_n + r * h_n)
        h_new = n + z * (h - n)                  # == (1-z)*n + z*h
        y_ref[s_eff] = h_new.astype(y_ref.dtype)
        return h_new

    h_scr[...] = lax.fori_loop(0, ts, step, h_scr[...], unroll=True)


def _gru_sequence(gi_all, whh_s, bhhn_s, h0_s, rev_flags, *, ts, bb, out_dtype):
    """gi_all: (T_pad, B_tot, 3*H_pad) f32, whh_s: (dirs, H_pad, 3*H_pad) bf16,
    bhhn_s: (dirs, 1, H_pad) f32, h0_s: (B_tot, H_pad) f32, rev_flags: (nb,) i32."""
    T_pad, B_tot, _ = gi_all.shape
    dirs, H_pad, _ = whh_s.shape
    assert B_tot % bb == 0
    nb = B_tot // bb
    n_chunks = T_pad // ts

    est = (H_pad * 3 * H_pad * 2                         # resident recurrent weight (bf16)
           + 2 * ts * bb * 3 * H_pad * 4                 # gi chunk pipeline (f32)
           + 2 * ts * bb * H_pad * jnp.dtype(out_dtype).itemsize   # y chunk pipeline
           + 2 * bb * H_pad * 4                          # h0
           + 2 * H_pad * 4                               # n-gate bias
           + bb * H_pad * 4)                             # hidden-state scratch
    # TODO(synk): for extremely large H (bf16 weights > ~24 MiB) also tile the 3H dim.

    kernel = partial(_gru_seq_kernel, ts=ts)

    def build(single_buffer):
        return pl.pallas_call(
            kernel,
            out_shape=jax.ShapeDtypeStruct((T_pad, B_tot, H_pad), out_dtype),
            grid_spec=pltpu.PrefetchScalarGridSpec(
                num_scalar_prefetch=1,                   # rev_flags -> SMEM
                grid=(nb, n_chunks),                     # batch blocks (parallel) x time chunks (serial)
                in_specs=[
                    # TS-step chunk of the precomputed input projection; time reversal
                    # for the reverse direction is expressed in the index_map.
                    pl.BlockSpec((ts, bb, 3 * H_pad),
                                 lambda b, c, rev: (c + rev[b] * (n_chunks - 1 - 2 * c), b, 0)),
                    # per-direction recurrent weight / n-gate bias: VMEM-resident
                    _resident_spec((1, H_pad, 3 * H_pad),
                                   lambda b, c, rev: (rev[b], 0, 0), single_buffer),
                    _resident_spec((1, 1, H_pad),
                                   lambda b, c, rev: (rev[b], 0, 0), single_buffer),
                    # initial hidden state for this batch block
                    pl.BlockSpec((bb, H_pad), lambda b, c, rev: (b, 0)),
                ],
                out_specs=pl.BlockSpec((ts, bb, H_pad),
                                       lambda b, c, rev: (c + rev[b] * (n_chunks - 1 - 2 * c), b, 0)),
                scratch_shapes=[pltpu.VMEM((bb, H_pad), jnp.float32)],
            ),
            compiler_params=pltpu.CompilerParams(
                dimension_semantics=("parallel", "arbitrary"),
                vmem_limit_bytes=_vmem_limit(est)),
        )(rev_flags, gi_all, whh_s, bhhn_s, h0_s)

    return _call_with_single_buffer_fallback(build)


# ----------------------------------------------------------------------------
# one GRU layer: all directions fused into a single recurrence pallas_call
# ----------------------------------------------------------------------------
def _gru_layer(x_seq, h0_list, params_list, *, out_dtype):
    """x_seq: (T, B, I); h0_list[d]: (B, H); params_list[d] = (w_ih, w_hh, b_ih, b_hh).
    Returns y: (T, B, dirs*H) and [h_last_d] each (B, H)."""
    T, B, I = x_seq.shape
    dirs = len(params_list)
    H = params_list[0][1].shape[1]

    H_pad = _round_up(H, 128)                 # lane-aligned gate slices, unmasked stores
    sub = _sublane_multiple(out_dtype)
    B_pad = _round_up(B, sub)                 # sublane-dense output stores
    I_pad = _round_up(I, 128)                 # dense MXU K dim for the input projection
    ts = _pick_time_chunk(T)
    T_pad = _round_up(T, ts)
    t_extra = T_pad - T

    # --- parameter prep (once per forward call; cache at load time in a real model) ---
    wih_cols, bgi_cols, whh_list, bhhn_list = [], [], [], []
    for (w_ih, w_hh, b_ih, b_hh) in params_list:
        b_ih3 = b_ih.reshape(3, H)
        b_hh3 = b_hh.reshape(3, H)
        # Fold b_hh for the r,z gates into the (hoisted) input-projection bias.
        b_gi = jnp.stack([b_ih3[0] + b_hh3[0], b_ih3[1] + b_hh3[1], b_ih3[2]])
        wih_cols.append(_prep_weight_t(w_ih, H, H_pad, I_pad))        # (I_pad, 3*H_pad) bf16
        bgi_cols.append(_pad_gates_bias(b_gi, H, H_pad))              # (1, 3*H_pad) f32
        whh_list.append(_prep_weight_t(w_hh, H, H_pad, H_pad))        # (H_pad, 3*H_pad) bf16
        bhhn_list.append(jnp.pad(b_hh3[2], (0, H_pad - H)).astype(jnp.float32))

    wih_all = jnp.concatenate(wih_cols, axis=1)        # (I_pad, dirs*3*H_pad)
    bgi_all = jnp.concatenate(bgi_cols, axis=1)        # (1, dirs*3*H_pad)
    whh_s = jnp.stack(whh_list, axis=0)                # (dirs, H_pad, 3*H_pad) bf16
    bhhn_s = jnp.stack(bhhn_list, axis=0).reshape(dirs, 1, H_pad)

    # --- (1) one MXU-filling bf16 matmul over all timesteps and both directions ---
    x_p = jnp.pad(x_seq, ((0, 0), (0, B_pad - B), (0, I_pad - I))).astype(jnp.bfloat16)
    gi = _input_projection(x_p.reshape(T * B_pad, I_pad), wih_all, bgi_all)
    gi = gi.reshape(T, B_pad, dirs * 3 * H_pad)
    # TODO(synk): optionally store gi in bf16 to halve the per-step HBM read on v5e.

    # --- (2) stack directions along the batch axis; time reversal lives in the
    #         recurrence index_map (no jnp.flip / extra HBM passes) ---
    gi_halves, h0_halves = [], []
    for d in range(dirs):
        gi_d = gi[:, :, d * 3 * H_pad:(d + 1) * 3 * H_pad]
        if d == 0:
            gi_d = jnp.pad(gi_d, ((0, t_extra), (0, 0), (0, 0)))   # trailing pad (discarded)
        else:
            gi_d = jnp.pad(gi_d, ((t_extra, 0), (0, 0), (0, 0)))   # leading pad for reverse dir
        gi_halves.append(gi_d)
        h0_halves.append(jnp.pad(h0_list[d].astype(jnp.float32),
                                 ((0, B_pad - B), (0, H_pad - H))))
    gi_stacked = jnp.concatenate(gi_halves, axis=1)     # (T_pad, dirs*B_pad, 3*H_pad)
    h0_stacked = jnp.concatenate(h0_halves, axis=0)     # (dirs*B_pad, H_pad)

    # Batch-block choice: one block per direction; split the unidirectional batch in
    # two only on multi-TensorCore chips (v7x) so the second core is not idle.
    blocks_per_dir = 1
    if (dirs == 1 and _num_tensorcores() >= 2
            and B_pad >= 2 * sub and (B_pad // 2) % sub == 0):
        blocks_per_dir = 2
    bb = B_pad // blocks_per_dir
    rev_flags = jnp.repeat(jnp.arange(dirs, dtype=jnp.int32), blocks_per_dir)

    y_p = _gru_sequence(gi_stacked, whh_s, bhhn_s, h0_stacked, rev_flags,
                        ts=ts, bb=bb, out_dtype=out_dtype)    # (T_pad, dirs*B_pad, H_pad)

    ys, h_last = [], []
    for d in range(dirs):
        blk = y_p[:, d * B_pad:d * B_pad + B, :H]
        if d == 0:
            y_d = blk[:T]
            h_last.append(y_d[T - 1])
        else:
            y_d = blk[t_extra:t_extra + T]
            h_last.append(y_d[0])
        ys.append(y_d)
    y = ys[0] if dirs == 1 else jnp.concatenate(ys, axis=-1)
    return y, h_last


# ----------------------------------------------------------------------------
# RNNBase-style forward (GRU mode): num_layers x (optionally) 2 directions
# ----------------------------------------------------------------------------
def gru_rnn_forward(x, hx=None, *, params, num_layers=1, bidirectional=False,
                    batch_first=False):
    """Mirrors RNNBase.forward for mode='GRU'. params[l*dirs+d] = (w_ih, w_hh, b_ih, b_hh)."""
    if batch_first:
        x = jnp.swapaxes(x, 0, 1)
    T, B, _ = x.shape
    dirs = 2 if bidirectional else 1
    H = params[0][1].shape[1]
    if hx is None:
        hx = jnp.zeros((num_layers * dirs, B, H), x.dtype)

    h_n = []
    inp = x
    for layer in range(num_layers):
        p_list = [params[layer * dirs + d] for d in range(dirs)]
        h0_list = [hx[layer * dirs + d] for d in range(dirs)]
        inp, h_last = _gru_layer(inp, h0_list, p_list, out_dtype=x.dtype)
        h_n.extend(h_last)
        # TODO(synk): inter-layer dropout (training mode) not implemented.
    # TODO(synk): PackedSequence / batch_sizes input path not implemented.
    # TODO(synk): RNN_TANH / RNN_RELU / LSTM cell variants not wired up (GRU only).
    output = inp
    if batch_first:
        output = jnp.swapaxes(output, 0, 1)
    return output, jnp.stack(h_n, axis=0)


# ----------------------------------------------------------------------------
# pure-JAX reference (mirror of torch _VF.gru semantics)
# ----------------------------------------------------------------------------
def _gru_cell_ref(x, h, w_ih, w_hh, b_ih, b_hh):
    H = h.shape[1]
    gi = x @ w_ih.T + b_ih
    gh = h @ w_hh.T + b_hh
    i_r, i_z, i_n = gi[:, :H], gi[:, H:2 * H], gi[:, 2 * H:]
    h_r, h_z, h_n = gh[:, :H], gh[:, H:2 * H], gh[:, 2 * H:]
    r = jax.nn.sigmoid(i_r + h_r)
    z = jax.nn.sigmoid(i_z + h_z)
    n = jnp.tanh(i_n + r * h_n)
    return (1.0 - z) * n + z * h


def gru_rnn_ref(x, hx, params, num_layers, bidirectional):
    T, _, _ = x.shape
    dirs = 2 if bidirectional else 1
    inp = x
    h_n = []
    for layer in range(num_layers):
        outs = []
        for d in range(dirs):
            w_ih, w_hh, b_ih, b_hh = params[layer * dirs + d]
            h = hx[layer * dirs + d]
            ts = range(T) if d == 0 else range(T - 1, -1, -1)
            ys = [None] * T
            for t in ts:
                h = _gru_cell_ref(inp[t], h, w_ih, w_hh, b_ih, b_hh)
                ys[t] = h
            outs.append(jnp.stack(ys, axis=0))
            h_n.append(h)
        inp = outs[0] if dirs == 1 else jnp.concatenate(outs, axis=-1)
    return inp, jnp.stack(h_n, axis=0)


# ----------------------------------------------------------------------------
if __name__ == "__main__":
    T, B, INPUT_SIZE, HIDDEN_SIZE = 8, 4, 16, 32

    def init_params(key, num_layers, bidirectional, input_size, hidden_size):
        dirs = 2 if bidirectional else 1
        stdv = 1.0 / math.sqrt(hidden_size)   # matches reset_parameters: U(-stdv, stdv)
        params = []
        for layer in range(num_layers):
            for _ in range(dirs):
                in_sz = input_size if layer == 0 else hidden_size * dirs
                key, k1, k2, k3, k4 = jax.random.split(key, 5)
                params.append((
                    jax.random.uniform(k1, (3 * hidden_size, in_sz), jnp.float32, -stdv, stdv),
                    jax.random.uniform(k2, (3 * hidden_size, hidden_size), jnp.float32, -stdv, stdv),
                    jax.random.uniform(k3, (3 * hidden_size,), jnp.float32, -stdv, stdv),
                    jax.random.uniform(k4, (3 * hidden_size,), jnp.float32, -stdv, stdv),
                ))
        return key, params

    # bf16 MXU operands (per the perf review) -> tolerance widened vs pure f32.
    def assert_close(a, b, msg, tol=5e-2):
        err = float(jnp.max(jnp.abs(a - b)))
        assert err <= tol, f"{msg}: max abs err {err}"

    key = jax.random.PRNGKey(0)
    key, kx, kh = jax.random.split(key, 3)
    x = jax.random.normal(kx, (T, B, INPUT_SIZE), jnp.float32)   # seq-major (batch_first=False)

    # Case 1: module defaults — num_layers=1, unidirectional, hx=None.
    key, params1 = init_params(key, 1, False, INPUT_SIZE, HIDDEN_SIZE)
    out1, hn1 = gru_rnn_forward(x, None, params=params1, num_layers=1, bidirectional=False)
    out1 = jax.block_until_ready(out1)
    ref_out1, ref_hn1 = gru_rnn_ref(
        x, jnp.zeros((1, B, HIDDEN_SIZE), jnp.float32), params1, 1, False)
    assert out1.shape == (T, B, HIDDEN_SIZE) and hn1.shape == (1, B, HIDDEN_SIZE)
    assert_close(out1, ref_out1, "layer-1 output")
    assert_close(hn1, ref_hn1, "layer-1 hidden")

    # Case 2: 2 layers, bidirectional, explicit h0 (both directions fused per layer).
    key, params2 = init_params(key, 2, True, INPUT_SIZE, HIDDEN_SIZE)
    hx2 = jax.random.normal(kh, (4, B, HIDDEN_SIZE), jnp.float32) * 0.1
    out2, hn2 = gru_rnn_forward(x, hx2, params=params2, num_layers=2, bidirectional=True)
    out2 = jax.block_until_ready(out2)
    ref_out2, ref_hn2 = gru_rnn_ref(x, hx2, params2, 2, True)
    assert out2.shape == (T, B, 2 * HIDDEN_SIZE) and hn2.shape == (4, B, HIDDEN_SIZE)
    assert_close(out2, ref_out2, "bi-layer output")
    assert_close(hn2, ref_hn2, "bi-layer hidden")

    print("KERNEL_OK")
</pallas_src>

<mosaic_0001>
module attributes {stable_mosaic.version = 11 : i64} {
  func.func @_in_proj_kernel(%arg0: i32, %arg1: i32, %arg2: memref<64x128xbf16, #tpu.memory_space<vmem>>, %arg3: memref<128x384xbf16, #tpu.memory_space<vmem>>, %arg4: memref<1x384xf32, #tpu.memory_space<vmem>>, %arg5: memref<64x384xf32, #tpu.memory_space<vmem>>) attributes {dimension_semantics = [#tpu.dimension_semantics<parallel>, #tpu.dimension_semantics<parallel>], iteration_bounds = array<i64: 1, 1>, scalar_prefetch = 0 : i64, scratch_operands = 0 : i64, tpu.core_type = #tpu.core_type<tc>, window_params = [{transform_indices = @transform_0, window_bounds = array<i64: 64, 128>}, {pipeline_mode = #tpu.pipeline_mode<synchronous>, transform_indices = @transform_1, window_bounds = array<i64: 128, 384>}, {transform_indices = @transform_2, window_bounds = array<i64: 1, 384>}, {transform_indices = @transform_3, window_bounds = array<i64: 64, 384>}]} {
    %c0 = arith.constant 0 : index
    %c0_0 = arith.constant 0 : index
    %0 = vector.load %arg2[%c0, %c0_0] : memref<64x128xbf16, #tpu.memory_space<vmem>>, vector<64x128xbf16>
    %c0_1 = arith.constant 0 : index
    %c0_2 = arith.constant 0 : index
    %1 = vector.load %arg3[%c0_1, %c0_2] : memref<128x384xbf16, #tpu.memory_space<vmem>>, vector<128x384xbf16>
    %cst = arith.constant dense<0.000000e+00> : vector<64x384xf32>
    %2 = tpu.matmul %0, %1, %cst {dimension_numbers = #tpu.dot_dimension_numbers<[1], [0], [0], [1], [0, 0, 1, 1], [], []>} : vector<64x128xbf16>, vector<128x384xbf16>, vector<64x384xf32> -> vector<64x384xf32>
    %c0_3 = arith.constant 0 : index
    %c0_4 = arith.constant 0 : index
    %3 = vector.load %arg4[%c0_3, %c0_4] : memref<1x384xf32, #tpu.memory_space<vmem>>, vector<1x384xf32>
    %4 = vector.broadcast %3 : vector<1x384xf32> to vector<64x384xf32>
    %5 = arith.addf %2, %4 : vector<64x384xf32>
    %c0_5 = arith.constant 0 : index
    %c0_6 = arith.constant 0 : index
    %6 = vector.load %arg5[%c0_5, %c0_6] : memref<64x384xf32, #tpu.memory_space<vmem>>, vector<64x384xf32>
    tpu.vector_store %arg5[%c0_5, %c0_6], %5 {strides = array<i32>} : memref<64x384xf32, #tpu.memory_space<vmem>>, vector<64x384xf32>,
    return
  }
  func.func @transform_0(%arg0: i32, %arg1: i32) -> (i32, i32) {
    %c0_i32 = arith.constant 0 : i32
    %c0_i32_0 = arith.constant 0 : i32
    return %arg1, %c0_i32 : i32, i32
  }
  func.func @transform_1(%arg0: i32, %arg1: i32) -> (i32, i32) {
    %c0_i32 = arith.constant 0 : i32
    %c0_i32_0 = arith.constant 0 : i32
    return %c0_i32, %arg0 : i32, i32
  }
  func.func @transform_2(%arg0: i32, %arg1: i32) -> (i32, i32) {
    %c0_i32 = arith.constant 0 : i32
    %c0_i32_0 = arith.constant 0 : i32
    return %c0_i32, %arg0 : i32, i32
  }
  func.func @transform_3(%arg0: i32, %arg1: i32) -> (i32, i32) {
    %c0_i32 = arith.constant 0 : i32
    return %arg1, %arg0 : i32, i32
  }
}

module attributes {stable_mosaic.version = 11 : i64} {
  func.func @_in_proj_kernel(%arg0: i32, %arg1: i32, %arg2: memref<64x128xbf16, #tpu.memory_space<vmem>>, %arg3: memref<128x384xbf16, #tpu.memory_space<vmem>>, %arg4: memref<1x384xf32, #tpu.memory_space<vmem>>, %arg5: memref<64x384xf32, #tpu.memory_space<vmem>>) attributes {dimension_semantics = [#tpu.dimension_semantics<parallel>, #tpu.dimension_semantics<parallel>], iteration_bounds = array<i64: 1, 1>, scalar_prefetch = 0 : i64, scratch_operands = 0 : i64, tpu.core_type = #tpu.core_type<tc>, window_params = [{transform_indices = @transform_0, window_bounds = array<i64: 64, 128>}, {transform_indices = @transform_1, window_bounds = array<i64: 128, 384>}, {transform_indices = @transform_2, window_bounds = array<i64: 1, 384>}, {transform_indices = @transform_3, window_bounds = array<i64: 64, 384>}]} {
    %c0 = arith.constant 0 : index
    %c0_0 = arith.constant 0 : index
    %0 = vector.load %arg2[%c0, %c0_0] : memref<64x128xbf16, #tpu.memory_space<vmem>>, vector<64x128xbf16>
    %c0_1 = arith.constant 0 : index
    %c0_2 = arith.constant 0 : index
    %1 = vector.load %arg3[%c0_1, %c0_2] : memref<128x384xbf16, #tpu.memory_space<vmem>>, vector<128x384xbf16>
    %cst = arith.constant dense<0.000000e+00> : vector<64x384xf32>
    %2 = tpu.matmul %0, %1, %cst {dimension_numbers = #tpu.dot_dimension_numbers<[1], [0], [0], [1], [0, 0, 1, 1], [], []>} : vector<64x128xbf16>, vector<128x384xbf16>, vector<64x384xf32> -> vector<64x384xf32>
    %c0_3 = arith.constant 0 : index
    %c0_4 = arith.constant 0 : index
    %3 = vector.load %arg4[%c0_3, %c0_4] : memref<1x384xf32, #tpu.memory_space<vmem>>, vector<1x384xf32>
    %4 = vector.broadcast %3 : vector<1x384xf32> to vector<64x384xf32>
    %5 = arith.addf %2, %4 : vector<64x384xf32>
    %c0_5 = arith.constant 0 : index
    %c0_6 = arith.constant 0 : index
    %6 = vector.load %arg5[%c0_5, %c0_6] : memref<64x384xf32, #tpu.memory_space<vmem>>, vector<64x384xf32>
    tpu.vector_store %arg5[%c0_5, %c0_6], %5 {strides = array<i32>} : memref<64x384xf32, #tpu.memory_space<vmem>>, vector<64x384xf32>,
    return
  }
  func.func @transform_0(%arg0: i32, %arg1: i32) -> (i32, i32) {
    %c0_i32 = arith.constant 0 : i32
    %c0_i32_0 = arith.constant 0 : i32
    return %arg1, %c0_i32 : i32, i32
  }
  func.func @transform_1(%arg0: i32, %arg1: i32) -> (i32, i32) {
    %c0_i32 = arith.constant 0 : i32
    %c0_i32_0 = arith.constant 0 : i32
    return %c0_i32, %arg0 : i32, i32
  }
  func.func @transform_2(%arg0: i32, %arg1: i32) -> (i32, i32) {
    %c0_i32 = arith.constant 0 : i32
    %c0_i32_0 = arith.constant 0 : i32
    return %c0_i32, %arg0 : i32, i32
  }
  func.func @transform_3(%arg0: i32, %arg1: i32) -> (i32, i32) {
    %c0_i32 = arith.constant 0 : i32
    return %arg1, %arg0 : i32, i32
  }
}

</mosaic_0001>

<llo_original>
// kernel: tpu_custom_call.1
$region0: #{tpu_custom_call.1}
  #allocation0 [shape = 'u32[]', space=smem, size = 0x4, offset = 0x4, fixed_abs, tag = 'smem constant byte address 0x4 - core index']
  #allocation1 [shape = 'u32[144,128]{1,0:T(1,128)}', space=vmem, size = 0x12000, scoped, tag = 'internal scratch']
  %s0 = inlined_call_operand.hbm [shape: bf16[64,128], index: 0, kind: input, shape index: {}]
  %s1 = inlined_call_operand.hbm [shape: bf16[128,384], index: 1, kind: input, shape index: {}]
  %s2 = inlined_call_operand.vmem [shape: f32[1,384], index: 2, kind: input, shape index: {}]
  %s3 = inlined_call_operand.hbm [shape: f32[64,384], index: 3, kind: output, shape index: {}]
  %s4 = sld [smem:[#allocation0]]
  $region30: #{tpu_custom_call.1} parent=0
    _
  %s6 = ssub.s32 1, %s4
  %s7 = scalar_select 0, %s6, %s4
  $region1: #{tpu_custom_call.1} parent=0
    #allocation2 [shape = 'u8[16384]{0}', space=vmem, size = 0x4000, scoped, tag = 'input window, operand 0, single buffered']
    #allocation3 [shape = 's32[1]{0}', space=sflag, size = 0x4, scoped, tag = 'scoped memory for tpu_custom_call.1']
    #allocation4 [shape = 's32[1]{0}', space=sflag, size = 0x4, scoped, tag = 'scoped memory for tpu_custom_call.1']
    #allocation5 [shape = 'u8[98304]{0}', space=vmem, size = 0x18000, scoped, tag = 'input window, operand 1, single buffered']
    #allocation6 [shape = 's32[1]{0}', space=sflag, size = 0x4, scoped, tag = 'scoped memory for tpu_custom_call.1']
    #allocation7 [shape = 'u8[98304]{0}', space=vmem, size = 0x18000, scoped, tag = 'output window, operand 0, single buffered']
    %8 = vsyncpa [#allocation3], 0
    %9 = vsyncpa [#allocation6], 0
    %10 = vsyncpa [#allocation4], 0
    // Predicated region
    $region2: #{tpu_custom_call.1} parent=1 // pred_check
      _
    $region3: #{tpu_custom_call.1} parent=1 // pred_check_branch
      %12 = sbr.rel (0) target = $region5
    $region4: #{tpu_custom_call.1} parent=1 // pred_region
      %s14 = ssub.s32 512, 512
      %15 = vsyncadd [#allocation3], %s14
      %s16 = sshll.u32 [#allocation2], 4
      %s17 = int_to_ptr.vmem [resolvable:$true] %s16
      %22 = dma.hbm_to_vmem [thread:$0]  %s0, 512, %s17, [#allocation3], 64, 64, 4
    $region5: #{tpu_custom_call.1} parent=1 // pred_fallthru
      _
    // Predicated region
    $region6: #{tpu_custom_call.1} parent=1 // pred_check
      _
    $region7: #{tpu_custom_call.1} parent=1 // pred_check_branch
      %24 = sbr.rel (0) target = $region9
    $region8: #{tpu_custom_call.1} parent=1 // pred_region
      %s26 = ssub.s32 3072, 3072
      %27 = vsyncadd [#allocation6], %s26
      %s28 = sshll.u32 [#allocation5], 4
      %s29 = int_to_ptr.vmem [resolvable:$true] %s28
      %34 = dma.hbm_to_vmem [thread:$0]  %s1, 3072, %s29, [#allocation6], 192, 192, 12
    $region9: #{tpu_custom_call.1} parent=1 // pred_fallthru
      _
    // Predicated region
    $region10: #{tpu_custom_call.1} parent=1 // pred_check
      _
    $region11: #{tpu_custom_call.1} parent=1 // pred_check_branch
      %36 = sbr.rel (0) target = $region13
    $region12: #{tpu_custom_call.1} parent=1 // pred_region
      _
    $region13: #{tpu_custom_call.1} parent=1 // pred_fallthru
      _
    // Predicated region
    $region14: #{tpu_custom_call.1} parent=1 // pred_check
      _
    $region15: #{tpu_custom_call.1} parent=1 // pred_check_branch
      %38 = sbr.rel (0) target = $region17
    $region16: #{tpu_custom_call.1} parent=1 // pred_region
      %39 = dma.done [#allocation3], 512
    $region17: #{tpu_custom_call.1} parent=1 // pred_fallthru
      _
    // Predicated region
    $region18: #{tpu_custom_call.1} parent=1 // pred_check
      _
    $region19: #{tpu_custom_call.1} parent=1 // pred_check_branch
      %41 = sbr.rel (0) target = $region21
    $region20: #{tpu_custom_call.1} parent=1 // pred_region
      %42 = dma.done [#allocation6], 3072
    $region21: #{tpu_custom_call.1} parent=1 // pred_fallthru
      _
    %v44 = vld [vmem:[#allocation2] sm:$0xf]
    %v45 = vld [vmem:[#allocation2 + $0x4] sm:$0xf]
    %v46 = vld [vmem:[#allocation2 + $0x8] sm:$0xf]
    %v47 = vld [vmem:[#allocation2 + $0xc] sm:$0xf]
    %v48 = vld [vmem:[#allocation2 + $0x10] sm:$0xf]
    %v49 = vld [vmem:[#allocation2 + $0x14] sm:$0xf]
    %v50 = vld [vmem:[#allocation2 + $0x18] sm:$0xf]
    %v51 = vld [vmem:[#allocation2 + $0x1c] sm:$0xf]
    %v52 = vld [vmem:[#allocation5] sm:$0xff]
    %v53 = vld [vmem:[#allocation5 + $0x8] sm:$0xf]
    %v54 = vld [vmem:[#allocation5 + $0xc] sm:$0xff]
    %v55 = vld [vmem:[#allocation5 + $0x14] sm:$0xf]
    %v56 = vld [vmem:[#allocation5 + $0x18] sm:$0xff]
    %v57 = vld [vmem:[#allocation5 + $0x20] sm:$0xf]
    %v58 = vld [vmem:[#allocation5 + $0x24] sm:$0xff]
    %v59 = vld [vmem:[#allocation5 + $0x2c] sm:$0xf]
    %v60 = vld [vmem:[#allocation5 + $0x30] sm:$0xff]
    %v61 = vld [vmem:[#allocation5 + $0x38] sm:$0xf]
    %v62 = vld [vmem:[#allocation5 + $0x3c] sm:$0xff]
    %v63 = vld [vmem:[#allocation5 + $0x44] sm:$0xf]
    %v64 = vld [vmem:[#allocation5 + $0x48] sm:$0xff]
    %v65 = vld [vmem:[#allocation5 + $0x50] sm:$0xf]
    %v66 = vld [vmem:[#allocation5 + $0x54] sm:$0xff]
    %v67 = vld [vmem:[#allocation5 + $0x5c] sm:$0xf]
    %v68 = vld [vmem:[#allocation5 + $0x60] sm:$0xff]
    %v69 = vld [vmem:[#allocation5 + $0x68] sm:$0xf]
    %v70 = vld [vmem:[#allocation5 + $0x6c] sm:$0xff]
    %v71 = vld [vmem:[#allocation5 + $0x74] sm:$0xf]
    %v72 = vld [vmem:[#allocation5 + $0x78] sm:$0xff]
    %v73 = vld [vmem:[#allocation5 + $0x80] sm:$0xf]
    %v74 = vld [vmem:[#allocation5 + $0x84] sm:$0xff]
    %v75 = vld [vmem:[#allocation5 + $0x8c] sm:$0xf]
    %v76 = vld [vmem:[#allocation5 + $0x90] sm:$0xff]
    %v77 = vld [vmem:[#allocation5 + $0x98] sm:$0xf]
    %v78 = vld [vmem:[#allocation5 + $0x9c] sm:$0xff]
    %v79 = vld [vmem:[#allocation5 + $0xa4] sm:$0xf]
    %v80 = vld [vmem:[#allocation5 + $0xa8] sm:$0xff]
    %v81 = vld [vmem:[#allocation5 + $0xb0] sm:$0xf]
    %v82 = vld [vmem:[#allocation5 + $0xb4] sm:$0xff]
    %v83 = vld [vmem:[#allocation5 + $0xbc] sm:$0xf]
    %v84 = vld [vmem:[%s2] sm:$0x7]
    %v86 = vlaneseq
    %v87 = vshrl.u32 %v86, 7
    %v88 = vsub.s32 0, %v87
    %v89 = vrot.slane %v84, %v88
    %v90 = vlaneseq
    %v91 = vshrl.u32 %v90, 7
    %v92 = vsub.s32 1, %v91
    %v93 = vrot.slane %v84, %v92
    %v94 = vlaneseq
    %v95 = vshrl.u32 %v94, 7
    %v96 = vsub.s32 2, %v95
    %v97 = vrot.slane %v84, %v96
    %v109 = vunpack.c.l.b16 %v44
    %v110 = vunpack.c.l.b16 %v45
    %v111 = vunpack.c.l.b16 %v46
    %v112 = vunpack.c.l.b16 %v47
    %v113 = vunpack.c.l.b16 %v48
    %v114 = vunpack.c.l.b16 %v49
    %v115 = vunpack.c.l.b16 %v50
    %v116 = vunpack.c.l.b16 %v51
    %v117 = vpack.c.b16 %v110, %v109
    %v118 = vpack.c.b16 %v112, %v111
    %v119 = vpack.c.b16 %v114, %v113
    %v120 = vpack.c.b16 %v116, %v115
    %v157 = vunpack.c.l.b16 %v52
    %v158 = vunpack.c.h.b16 %v52
    %v159 = vunpack.c.l.b16 %v53
    %v160 = vunpack.c.l.b16 %v54
    %v161 = vunpack.c.h.b16 %v54
    %v162 = vunpack.c.l.b16 %v55
    %v163 = vunpack.c.l.b16 %v56
    %v164 = vunpack.c.h.b16 %v56
    %v165 = vunpack.c.l.b16 %v57
    %v166 = vunpack.c.l.b16 %v58
    %v167 = vunpack.c.h.b16 %v58
    %v168 = vunpack.c.l.b16 %v59
    %v169 = vunpack.c.l.b16 %v60
    %v170 = vunpack.c.h.b16 %v60
    %v171 = vunpack.c.l.b16 %v61
    %v172 = vunpack.c.l.b16 %v62
    %v173 = vunpack.c.h.b16 %v62
    %v174 = vunpack.c.l.b16 %v63
    %v175 = vunpack.c.l.b16 %v64
    %v176 = vunpack.c.h.b16 %v64
    %v177 = vunpack.c.l.b16 %v65
    %v178 = vunpack.c.l.b16 %v66
    %v179 = vunpack.c.h.b16 %v66
    %v180 = vunpack.c.l.b16 %v67
    %v181 = vunpack.c.l.b16 %v68
    %v182 = vunpack.c.h.b16 %v68
    %v183 = vunpack.c.l.b16 %v69
    %v184 = vunpack.c.l.b16 %v70
    %v185 = vunpack.c.h.b16 %v70
    %v186 = vunpack.c.l.b16 %v71
    %v187 = vunpack.c.l.b16 %v72
    %v188 = vunpack.c.h.b16 %v72
    %v189 = vunpack.c.l.b16 %v73
    %v190 = vunpack.c.l.b16 %v74
    %v191 = vunpack.c.h.b16 %v74
    %v192 = vunpack.c.l.b16 %v75
    %v193 = vunpack.c.l.b16 %v76
    %v194 = vunpack.c.h.b16 %v76
    %v195 = vunpack.c.l.b16 %v77
    %v196 = vunpack.c.l.b16 %v78
    %v197 = vunpack.c.h.b16 %v78
    %v198 = vunpack.c.l.b16 %v79
    %v199 = vunpack.c.l.b16 %v80
    %v200 = vunpack.c.h.b16 %v80
    %v201 = vunpack.c.l.b16 %v81
    %v202 = vunpack.c.l.b16 %v82
    %v203 = vunpack.c.h.b16 %v82
    %v204 = vunpack.c.l.b16 %v83
    %v205 = vpack.c.b16 %v160, %v157
    %v206 = vpack.c.b16 %v161, %v158
    %v207 = vpack.c.b16 %v162, %v159
    %v208 = vpack.c.b16 %v166, %v163
    %v209 = vpack.c.b16 %v167, %v164
    %v210 = vpack.c.b16 %v168, %v165
    %v211 = vpack.c.b16 %v172, %v169
    %v212 = vpack.c.b16 %v173, %v170
    %v213 = vpack.c.b16 %v174, %v171
    %v214 = vpack.c.b16 %v178, %v175
    %v215 = vpack.c.b16 %v179, %v176
    %v216 = vpack.c.b16 %v180, %v177
    %v217 = vpack.c.b16 %v184, %v181
    %v218 = vpack.c.b16 %v185, %v182
    %v219 = vpack.c.b16 %v186, %v183
    %v220 = vpack.c.b16 %v190, %v187
    %v221 = vpack.c.b16 %v191, %v188
    %v222 = vpack.c.b16 %v192, %v189
    %v223 = vpack.c.b16 %v196, %v193
    %v224 = vpack.c.b16 %v197, %v194
    %v225 = vpack.c.b16 %v198, %v195
    %v226 = vpack.c.b16 %v202, %v199
    %v227 = vpack.c.b16 %v203, %v200
    %v228 = vpack.c.b16 %v204, %v201
    %253 = vmatprep.subr.bf16.mxu0 %v206
    %254 = vmatpush1.bf16.msra.mxu0 %v205
    %255 = vmatprep.subr.bf16.mxu0 %v209
    %256 = vmatpush1.bf16.msra.mxu0 %v208
    %257 = vmatprep.subr.bf16.mxu0 %v212
    %258 = vmatpush1.bf16.msra.mxu0 %v211
    %259 = vmatprep.subr.bf16.mxu0 %v215
    %260 = vmatpush1.bf16.msra.mxu0 %v214
    %261 = vmatprep.subr.bf16.mxu0 %v218
    %262 = vmatpush1.bf16.msra.mxu0 %v217
    %263 = vmatprep.subr.bf16.mxu0 %v221
    %264 = vmatpush1.bf16.msra.mxu0 %v220
    %265 = vmatprep.subr.bf16.mxu0 %v224
    %266 = vmatpush1.bf16.msra.mxu0 %v223
    %267 = vmatprep.subr.bf16.mxu0 %v227
    %268 = vmatpush1.bf16.msra.mxu0 %v226
    %269 = vmatprep.subr.bf16.mxu0 0
    %270 = vmatpush1.bf16.msra.mxu0 0
    %271 = vmatprep.subr.bf16.mxu0 0
    %272 = vmatpush1.bf16.msra.mxu0 0
    %273 = vmatprep.subr.bf16.mxu0 0
    %274 = vmatpush1.bf16.msra.mxu0 0
    %275 = vmatprep.subr.bf16.mxu0 0
    %276 = vmatpush1.bf16.msra.mxu0 0
    %277 = vmatprep.subr.bf16.mxu0 0
    %278 = vmatpush1.bf16.msra.mxu0 0
    %279 = vmatprep.subr.bf16.mxu0 0
    %280 = vmatpush1.bf16.msra.mxu0 0
    %281 = vmatprep.subr.bf16.mxu0 0
    %282 = vmatpush1.bf16.msra.mxu0 0
    %283 = vmatprep.subr.bf16.mxu0 0
    %284 = vmatpush1.bf16.msra.mxu0 0
    %285 = vmatprep.mubr.bf16.mxu0 0
    %286 = vmatmul.mubr.bf16.gmra.mrb[0].mxu0 %v117
    %v287 = vpop.f32.mrb[0].mxu0
    %v288 = vadd.f32 %v89, %v287
    %v289 = vpop.f32.mrb[0].mxu0
    %v290 = vadd.f32 %v93, %v289
    %v291 = vpop.f32.mrb[0].mxu0
    %v292 = vadd.f32 %v89, %v291
    %v293 = vpop.f32.mrb[0].mxu0
    %v294 = vadd.f32 %v93, %v293
    %295 = vmatprep.mubr.bf16.mxu0 0
    %296 = vmatmul.mubr.bf16.gmra.mrb[0].mxu0 %v118
    %v297 = vpop.f32.mrb[0].mxu0
    %v298 = vadd.f32 %v89, %v297
    %v299 = vpop.f32.mrb[0].mxu0
    %v300 = vadd.f32 %v93, %v299
    %v301 = vpop.f32.mrb[0].mxu0
    %v302 = vadd.f32 %v89, %v301
    %v303 = vpop.f32.mrb[0].mxu0
    %v304 = vadd.f32 %v93, %v303
    %305 = vmatprep.mubr.bf16.mxu0 0
    %306 = vmatmul.mubr.bf16.gmra.mrb[0].mxu0 %v119
    %v307 = vpop.f32.mrb[0].mxu0
    %v308 = vadd.f32 %v89, %v307
    %v309 = vpop.f32.mrb[0].mxu0
    %v310 = vadd.f32 %v93, %v309
    %v311 = vpop.f32.mrb[0].mxu0
    %v312 = vadd.f32 %v89, %v311
    %v313 = vpop.f32.mrb[0].mxu0
    %v314 = vadd.f32 %v93, %v313
    %315 = vmatprep.mubr.bf16.mxu0 0
    %316 = vmatmul.mubr.bf16.gmra.mrb[0].mxu0 %v120
    %v317 = vpop.f32.mrb[0].mxu0
    %v318 = vadd.f32 %v89, %v317
    %v319 = vpop.f32.mrb[0].mxu0
    %v320 = vadd.f32 %v93, %v319
    %v321 = vpop.f32.mrb[0].mxu0
    %v322 = vadd.f32 %v89, %v321
    %v323 = vpop.f32.mrb[0].mxu0
    %v324 = vadd.f32 %v93, %v323
    %325 = vdwg.mxu0
    %326 = vmatprep.subr.bf16.mxu0 0
    %327 = vmatpush1.bf16.msra.mxu0 %v207
    %328 = vmatprep.subr.bf16.mxu0 0
    %329 = vmatpush1.bf16.msra.mxu0 %v210
    %330 = vmatprep.subr.bf16.mxu0 0
    %331 = vmatpush1.bf16.msra.mxu0 %v213
    %332 = vmatprep.subr.bf16.mxu0 0
    %333 = vmatpush1.bf16.msra.mxu0 %v216
    %334 = vmatprep.subr.bf16.mxu0 0
    %335 = vmatpush1.bf16.msra.mxu0 %v219
    %336 = vmatprep.subr.bf16.mxu0 0
    %337 = vmatpush1.bf16.msra.mxu0 %v222
    %338 = vmatprep.subr.bf16.mxu0 0
    %339 = vmatpush1.bf16.msra.mxu0 %v225
    %340 = vmatprep.subr.bf16.mxu0 0
    %341 = vmatpush1.bf16.msra.mxu0 %v228
    %342 = vmatprep.subr.bf16.mxu0 0
    %343 = vmatpush1.bf16.msra.mxu0 0
    %344 = vmatprep.subr.bf16.mxu0 0
    %345 = vmatpush1.bf16.msra.mxu0 0
    %346 = vmatprep.subr.bf16.mxu0 0
    %347 = vmatpush1.bf16.msra.mxu0 0
    %348 = vmatprep.subr.bf16.mxu0 0
    %349 = vmatpush1.bf16.msra.mxu0 0
    %350 = vmatprep.subr.bf16.mxu0 0
    %351 = vmatpush1.bf16.msra.mxu0 0
    %352 = vmatprep.subr.bf16.mxu0 0
    %353 = vmatpush1.bf16.msra.mxu0 0
    %354 = vmatprep.subr.bf16.mxu0 0
    %355 = vmatpush1.bf16.msra.mxu0 0
    %356 = vmatprep.subr.bf16.mxu0 0
    %357 = vmatpush1.bf16.msra.mxu0 0
    %358 = vmatprep.mubr.bf16.mxu0 0
    %359 = vmatmul.mubr.bf16.gmra.mrb[0].mxu0 %v117
    %v360 = vpop.f32.mrb[0].mxu0
    %v361 = vadd.f32 %v97, %v360
    %v362 = vpop.f32.mrb[0].mxu0
    %v363 = vpop.f32.mrb[0].mxu0
    %v364 = vadd.f32 %v97, %v363
    %v365 = vpop.f32.mrb[0].mxu0
    %366 = vmatprep.mubr.bf16.mxu0 0
    %367 = vmatmul.mubr.bf16.gmra.mrb[0].mxu0 %v118
    %v368 = vpop.f32.mrb[0].mxu0
    %v369 = vadd.f32 %v97, %v368
    %v370 = vpop.f32.mrb[0].mxu0
    %v371 = vpop.f32.mrb[0].mxu0
    %v372 = vadd.f32 %v97, %v371
    %v373 = vpop.f32.mrb[0].mxu0
    %374 = vmatprep.mubr.bf16.mxu0 0
    %375 = vmatmul.mubr.bf16.gmra.mrb[0].mxu0 %v119
    %v376 = vpop.f32.mrb[0].mxu0
    %v377 = vadd.f32 %v97, %v376
    %v378 = vpop.f32.mrb[0].mxu0
    %v379 = vpop.f32.mrb[0].mxu0
    %v380 = vadd.f32 %v97, %v379
    %v381 = vpop.f32.mrb[0].mxu0
    %382 = vmatprep.mubr.bf16.mxu0 0
    %383 = vmatmul.mubr.bf16.gmra.mrb[0].mxu0 %v120
    %v384 = vpop.f32.mrb[0].mxu0
    %v385 = vadd.f32 %v97, %v384
    %v386 = vpop.f32.mrb[0].mxu0
    %v387 = vpop.f32.mrb[0].mxu0
    %v388 = vadd.f32 %v97, %v387
    %v389 = vpop.f32.mrb[0].mxu0
    %390 = vdwg.mxu0
    %391 = vst [vmem:[#allocation7] sm:$0xff] %v288
    %392 = vst [vmem:[#allocation7 + $0x8] sm:$0xff] %v290
    %393 = vst [vmem:[#allocation7 + $0x10] sm:$0xff] %v361
    %394 = vst [vmem:[#allocation7 + $0x18] sm:$0xff] %v292
    %395 = vst [vmem:[#allocation7 + $0x20] sm:$0xff] %v294
    %396 = vst [vmem:[#allocation7 + $0x28] sm:$0xff] %v364
    %397 = vst [vmem:[#allocation7 + $0x30] sm:$0xff] %v298
    %398 = vst [vmem:[#allocation7 + $0x38] sm:$0xff] %v300
    %399 = vst [vmem:[#allocation7 + $0x40] sm:$0xff] %v369
    %400 = vst [vmem:[#allocation7 + $0x48] sm:$0xff] %v302
    %401 = vst [vmem:[#allocation7 + $0x50] sm:$0xff] %v304
    %402 = vst [vmem:[#allocation7 + $0x58] sm:$0xff] %v372
    %403 = vst [vmem:[#allocation7 + $0x60] sm:$0xff] %v308
    %404 = vst [vmem:[#allocation7 + $0x68] sm:$0xff] %v310
    %405 = vst [vmem:[#allocation7 + $0x70] sm:$0xff] %v377
    %406 = vst [vmem:[#allocation7 + $0x78] sm:$0xff] %v312
    %407 = vst [vmem:[#allocation7 + $0x80] sm:$0xff] %v314
    %408 = vst [vmem:[#allocation7 + $0x88] sm:$0xff] %v380
    %409 = vst [vmem:[#allocation7 + $0x90] sm:$0xff] %v318
    %410 = vst [vmem:[#allocation7 + $0x98] sm:$0xff] %v320
    %411 = vst [vmem:[#allocation7 + $0xa0] sm:$0xff] %v385
    %412 = vst [vmem:[#allocation7 + $0xa8] sm:$0xff] %v322
    %413 = vst [vmem:[#allocation7 + $0xb0] sm:$0xff] %v324
    %414 = vst [vmem:[#allocation7 + $0xb8] sm:$0xff] %v388
    // Predicated region
    $region22: #{tpu_custom_call.1} parent=1 // pred_check
      _
    $region23: #{tpu_custom_call.1} parent=1 // pred_check_branch
      %416 = sbr.rel (0) target = $region25
    $region24: #{tpu_custom_call.1} parent=1 // pred_region
      %s418 = ssub.s32 3072, 3072
      %419 = vsyncadd [#allocation4], %s418
      %s420 = sshll.u32 [#allocation7], 4
      %s421 = int_to_ptr.vmem [resolvable:$true] %s420
      %426 = dma.vmem_to_hbm [thread:$0]  %s421, 3072, %s3, [#allocation4], 384, 384, 24
    $region25: #{tpu_custom_call.1} parent=1 // pred_fallthru
      _
    // Predicated region
    $region26: #{tpu_custom_call.1} parent=1 // pred_check
      _
    $region27: #{tpu_custom_call.1} parent=1 // pred_check_branch
      %428 = sbr.rel (0) target = $region29
    $region28: #{tpu_custom_call.1} parent=1 // pred_region
      %429 = dma.done [#allocation4], 3072
    $region29: #{tpu_custom_call.1} parent=1 // pred_fallthru
      _
    %430 = vsyncpa [#allocation3], 1
    %431 = vsyncpa [#allocation6], 1
    %432 = vsyncpa [#allocation4], 1

// kernel: tpu_custom_call.1
$region0: #{tpu_custom_call.1}
  #allocation0 [shape = 'u32[]', space=smem, size = 0x4, offset = 0x4, fixed_abs, tag = 'smem constant byte address 0x4 - core index']
  #allocation1 [shape = 'u32[144,128]{1,0:T(1,128)}', space=vmem, size = 0x12000, scoped, tag = 'internal scratch']
  %s0 = inlined_call_operand.hbm [shape: bf16[64,128], index: 0, kind: input, shape index: {}]
  %s1 = inlined_call_operand.hbm [shape: bf16[128,384], index: 1, kind: input, shape index: {}]
  %s2 = inlined_call_operand.vmem [shape: f32[1,384], index: 2, kind: input, shape index: {}]
  %s3 = inlined_call_operand.hbm [shape: f32[64,384], index: 3, kind: output, shape index: {}]
  %s4 = sld [smem:[#allocation0]]
  $region30: #{tpu_custom_call.1} parent=0
    _
  %s6 = ssub.s32 1, %s4
  %s7 = scalar_select 0, %s6, %s4
  $region1: #{tpu_custom_call.1} parent=0
    #allocation2 [shape = 'u8[16384]{0}', space=vmem, size = 0x4000, scoped, tag = 'input window, operand 0, single buffered']
    #allocation3 [shape = 's32[1]{0}', space=sflag, size = 0x4, scoped, tag = 'scoped memory for tpu_custom_call.1']
    #allocation4 [shape = 's32[1]{0}', space=sflag, size = 0x4, scoped, tag = 'scoped memory for tpu_custom_call.1']
    #allocation5 [shape = 'u8[98304]{0}', space=vmem, size = 0x18000, scoped, tag = 'input window, operand 1, single buffered']
    #allocation6 [shape = 's32[1]{0}', space=sflag, size = 0x4, scoped, tag = 'scoped memory for tpu_custom_call.1']
    #allocation7 [shape = 'u8[98304]{0}', space=vmem, size = 0x18000, scoped, tag = 'output window, operand 0, single buffered']
    %8 = vsyncpa [#allocation3], 0
    %9 = vsyncpa [#allocation6], 0
    %10 = vsyncpa [#allocation4], 0
    // Predicated region
    $region2: #{tpu_custom_call.1} parent=1 // pred_check
      _
    $region3: #{tpu_custom_call.1} parent=1 // pred_check_branch
      %12 = sbr.rel (0) target = $region5
    $region4: #{tpu_custom_call.1} parent=1 // pred_region
      %s14 = ssub.s32 512, 512
      %15 = vsyncadd [#allocation3], %s14
      %s16 = sshll.u32 [#allocation2], 4
      %s17 = int_to_ptr.vmem [resolvable:$true] %s16
      %22 = dma.hbm_to_vmem [thread:$0]  %s0, 512, %s17, [#allocation3], 64, 64, 4
    $region5: #{tpu_custom_call.1} parent=1 // pred_fallthru
      _
    // Predicated region
    $region6: #{tpu_custom_call.1} parent=1 // pred_check
      _
    $region7: #{tpu_custom_call.1} parent=1 // pred_check_branch
      %24 = sbr.rel (0) target = $region9
    $region8: #{tpu_custom_call.1} parent=1 // pred_region
      %s26 = ssub.s32 3072, 3072
      %27 = vsyncadd [#allocation6], %s26
      %s28 = sshll.u32 [#allocation5], 4
      %s29 = int_to_ptr.vmem [resolvable:$true] %s28
      %34 = dma.hbm_to_vmem [thread:$0]  %s1, 3072, %s29, [#allocation6], 192, 192, 12
    $region9: #{tpu_custom_call.1} parent=1 // pred_fallthru
      _
    // Predicated region
    $region10: #{tpu_custom_call.1} parent=1 // pred_check
      _
    $region11: #{tpu_custom_call.1} parent=1 // pred_check_branch
      %36 = sbr.rel (0) target = $region13
    $region12: #{tpu_custom_call.1} parent=1 // pred_region
      _
    $region13: #{tpu_custom_call.1} parent=1 // pred_fallthru
      _
    // Predicated region
    $region14: #{tpu_custom_call.1} parent=1 // pred_check
      _
    $region15: #{tpu_custom_call.1} parent=1 // pred_check_branch
      %38 = sbr.rel (0) target = $region17
    $region16: #{tpu_custom_call.1} parent=1 // pred_region
      %39 = dma.done [#allocation3], 512
    $region17: #{tpu_custom_call.1} parent=1 // pred_fallthru
      _
    // Predicated region
    $region18: #{tpu_custom_call.1} parent=1 // pred_check
      _
    $region19: #{tpu_custom_call.1} parent=1 // pred_check_branch
      %41 = sbr.rel (0) target = $region21
    $region20: #{tpu_custom_call.1} parent=1 // pred_region
      %42 = dma.done [#allocation6], 3072
    $region21: #{tpu_custom_call.1} parent=1 // pred_fallthru
      _
    %v44 = vld [vmem:[#allocation2] sm:$0xf]
    %v45 = vld [vmem:[#allocation2 + $0x4] sm:$0xf]
    %v46 = vld [vmem:[#allocation2 + $0x8] sm:$0xf]
    %v47 = vld [vmem:[#allocation2 + $0xc] sm:$0xf]
    %v48 = vld [vmem:[#allocation2 + $0x10] sm:$0xf]
    %v49 = vld [vmem:[#allocation2 + $0x14] sm:$0xf]
    %v50 = vld [vmem:[#allocation2 + $0x18] sm:$0xf]
    %v51 = vld [vmem:[#allocation2 + $0x1c] sm:$0xf]
    %v52 = vld [vmem:[#allocation5] sm:$0xff]
    %v53 = vld [vmem:[#allocation5 + $0x8] sm:$0xf]
    %v54 = vld [vmem:[#allocation5 + $0xc] sm:$0xff]
    %v55 = vld [vmem:[#allocation5 + $0x14] sm:$0xf]
    %v56 = vld [vmem:[#allocation5 + $0x18] sm:$0xff]
    %v57 = vld [vmem:[#allocation5 + $0x20] sm:$0xf]
    %v58 = vld [vmem:[#allocation5 + $0x24] sm:$0xff]
    %v59 = vld [vmem:[#allocation5 + $0x2c] sm:$0xf]
    %v60 = vld [vmem:[#allocation5 + $0x30] sm:$0xff]
    %v61 = vld [vmem:[#allocation5 + $0x38] sm:$0xf]
    %v62 = vld [vmem:[#allocation5 + $0x3c] sm:$0xff]
    %v63 = vld [vmem:[#allocation5 + $0x44] sm:$0xf]
    %v64 = vld [vmem:[#allocation5 + $0x48] sm:$0xff]
    %v65 = vld [vmem:[#allocation5 + $0x50] sm:$0xf]
    %v66 = vld [vmem:[#allocation5 + $0x54] sm:$0xff]
    %v67 = vld [vmem:[#allocation5 + $0x5c] sm:$0xf]
    %v68 = vld [vmem:[#allocation5 + $0x60] sm:$0xff]
    %v69 = vld [vmem:[#allocation5 + $0x68] sm:$0xf]
    %v70 = vld [vmem:[#allocation5 + $0x6c] sm:$0xff]
    %v71 = vld [vmem:[#allocation5 + $0x74] sm:$0xf]
    %v72 = vld [vmem:[#allocation5 + $0x78] sm:$0xff]
    %v73 = vld [vmem:[#allocation5 + $0x80] sm:$0xf]
    %v74 = vld [vmem:[#allocation5 + $0x84] sm:$0xff]
    %v75 = vld [vmem:[#allocation5 + $0x8c] sm:$0xf]
    %v76 = vld [vmem:[#allocation5 + $0x90] sm:$0xff]
    %v77 = vld [vmem:[#allocation5 + $0x98] sm:$0xf]
    %v78 = vld [vmem:[#allocation5 + $0x9c] sm:$0xff]
    %v79 = vld [vmem:[#allocation5 + $0xa4] sm:$0xf]
    %v80 = vld [vmem:[#allocation5 + $0xa8] sm:$0xff]
    %v81 = vld [vmem:[#allocation5 + $0xb0] sm:$0xf]
    %v82 = vld [vmem:[#allocation5 + $0xb4] sm:$0xff]
    %v83 = vld [vmem:[#allocation5 + $0xbc] sm:$0xf]
    %v84 = vld [vmem:[%s2] sm:$0x7]
    %v86 = vlaneseq
    %v87 = vshrl.u32 %v86, 7
    %v88 = vsub.s32 0, %v87
    %v89 = vrot.slane %v84, %v88
    %v90 = vlaneseq
    %v91 = vshrl.u32 %v90, 7
    %v92 = vsub.s32 1, %v91
    %v93 = vrot.slane %v84, %v92
    %v94 = vlaneseq
    %v95 = vshrl.u32 %v94, 7
    %v96 = vsub.s32 2, %v95
    %v97 = vrot.slane %v84, %v96
    %v109 = vunpack.c.l.b16 %v44
    %v110 = vunpack.c.l.b16 %v45
    %v111 = vunpack.c.l.b16 %v46
    %v112 = vunpack.c.l.b16 %v47
    %v113 = vunpack.c.l.b16 %v48
    %v114 = vunpack.c.l.b16 %v49
    %v115 = vunpack.c.l.b16 %v50
    %v116 = vunpack.c.l.b16 %v51
    %v117 = vpack.c.b16 %v110, %v109
    %v118 = vpack.c.b16 %v112, %v111
    %v119 = vpack.c.b16 %v114, %v113
    %v120 = vpack.c.b16 %v116, %v115
    %v157 = vunpack.c.l.b16 %v52
    %v158 = vunpack.c.h.b16 %v52
    %v159 = vunpack.c.l.b16 %v53
    %v160 = vunpack.c.l.b16 %v54
    %v161 = vunpack.c.h.b16 %v54
    %v162 = vunpack.c.l.b16 %v55
    %v163 = vunpack.c.l.b16 %v56
    %v164 = vunpack.c.h.b16 %v56
    %v165 = vunpack.c.l.b16 %v57
    %v166 = vunpack.c.l.b16 %v58
    %v167 = vunpack.c.h.b16 %v58
    %v168 = vunpack.c.l.b16 %v59
    %v169 = vunpack.c.l.b16 %v60
    %v170 = vunpack.c.h.b16 %v60
    %v171 = vunpack.c.l.b16 %v61
    %v172 = vunpack.c.l.b16 %v62
    %v173 = vunpack.c.h.b16 %v62
    %v174 = vunpack.c.l.b16 %v63
    %v175 = vunpack.c.l.b16 %v64
    %v176 = vunpack.c.h.b16 %v64
    %v177 = vunpack.c.l.b16 %v65
    %v178 = vunpack.c.l.b16 %v66
    %v179 = vunpack.c.h.b16 %v66
    %v180 = vunpack.c.l.b16 %v67
    %v181 = vunpack.c.l.b16 %v68
    %v182 = vunpack.c.h.b16 %v68
    %v183 = vunpack.c.l.b16 %v69
    %v184 = vunpack.c.l.b16 %v70
    %v185 = vunpack.c.h.b16 %v70
    %v186 = vunpack.c.l.b16 %v71
    %v187 = vunpack.c.l.b16 %v72
    %v188 = vunpack.c.h.b16 %v72
    %v189 = vunpack.c.l.b16 %v73
    %v190 = vunpack.c.l.b16 %v74
    %v191 = vunpack.c.h.b16 %v74
    %v192 = vunpack.c.l.b16 %v75
    %v193 = vunpack.c.l.b16 %v76
    %v194 = vunpack.c.h.b16 %v76
    %v195 = vunpack.c.l.b16 %v77
    %v196 = vunpack.c.l.b16 %v78
    %v197 = vunpack.c.h.b16 %v78
    %v198 = vunpack.c.l.b16 %v79
    %v199 = vunpack.c.l.b16 %v80
    %v200 = vunpack.c.h.b16 %v80
    %v201 = vunpack.c.l.b16 %v81
    %v202 = vunpack.c.l.b16 %v82
    %v203 = vunpack.c.h.b16 %v82
    %v204 = vunpack.c.l.b16 %v83
    %v205 = vpack.c.b16 %v160, %v157
    %v206 = vpack.c.b16 %v161, %v158
    %v207 = vpack.c.b16 %v162, %v159
    %v208 = vpack.c.b16 %v166, %v163
    %v209 = vpack.c.b16 %v167, %v164
    %v210 = vpack.c.b16 %v168, %v165
    %v211 = vpack.c.b16 %v172, %v169
    %v212 = vpack.c.b16 %v173, %v170
    %v213 = vpack.c.b16 %v174, %v171
    %v214 = vpack.c.b16 %v178, %v175
    %v215 = vpack.c.b16 %v179, %v176
    %v216 = vpack.c.b16 %v180, %v177
    %v217 = vpack.c.b16 %v184, %v181
    %v218 = vpack.c.b16 %v185, %v182
    %v219 = vpack.c.b16 %v186, %v183
    %v220 = vpack.c.b16 %v190, %v187
    %v221 = vpack.c.b16 %v191, %v188
    %v222 = vpack.c.b16 %v192, %v189
    %v223 = vpack.c.b16 %v196, %v193
    %v224 = vpack.c.b16 %v197, %v194
    %v225 = vpack.c.b16 %v198, %v195
    %v226 = vpack.c.b16 %v202, %v199
    %v227 = vpack.c.b16 %v203, %v200
    %v228 = vpack.c.b16 %v204, %v201
    %253 = vmatprep.subr.bf16.mxu0 %v206
    %254 = vmatpush1.bf16.msra.mxu0 %v205
    %255 = vmatprep.subr.bf16.mxu0 %v209
    %256 = vmatpush1.bf16.msra.mxu0 %v208
    %257 = vmatprep.subr.bf16.mxu0 %v212
    %258 = vmatpush1.bf16.msra.mxu0 %v211
    %259 = vmatprep.subr.bf16.mxu0 %v215
    %260 = vmatpush1.bf16.msra.mxu0 %v214
    %261 = vmatprep.subr.bf16.mxu0 %v218
    %262 = vmatpush1.bf16.msra.mxu0 %v217
    %263 = vmatprep.subr.bf16.mxu0 %v221
    %264 = vmatpush1.bf16.msra.mxu0 %v220
    %265 = vmatprep.subr.bf16.mxu0 %v224
    %266 = vmatpush1.bf16.msra.mxu0 %v223
    %267 = vmatprep.subr.bf16.mxu0 %v227
    %268 = vmatpush1.bf16.msra.mxu0 %v226
    %269 = vmatprep.subr.bf16.mxu0 0
    %270 = vmatpush1.bf16.msra.mxu0 0
    %271 = vmatprep.subr.bf16.mxu0 0
    %272 = vmatpush1.bf16.msra.mxu0 0
    %273 = vmatprep.subr.bf16.mxu0 0
    %274 = vmatpush1.bf16.msra.mxu0 0
    %275 = vmatprep.subr.bf16.mxu0 0
    %276 = vmatpush1.bf16.msra.mxu0 0
    %277 = vmatprep.subr.bf16.mxu0 0
    %278 = vmatpush1.bf16.msra.mxu0 0
    %279 = vmatprep.subr.bf16.mxu0 0
    %280 = vmatpush1.bf16.msra.mxu0 0
    %281 = vmatprep.subr.bf16.mxu0 0
    %282 = vmatpush1.bf16.msra.mxu0 0
    %283 = vmatprep.subr.bf16.mxu0 0
    %284 = vmatpush1.bf16.msra.mxu0 0
    %285 = vmatprep.mubr.bf16.mxu0 0
    %286 = vmatmul.mubr.bf16.gmra.mrb[0].mxu0 %v117
    %v287 = vpop.f32.mrb[0].mxu0
    %v288 = vadd.f32 %v89, %v287
    %v289 = vpop.f32.mrb[0].mxu0
    %v290 = vadd.f32 %v93, %v289
    %v291 = vpop.f32.mrb[0].mxu0
    %v292 = vadd.f32 %v89, %v291
    %v293 = vpop.f32.mrb[0].mxu0
    %v294 = vadd.f32 %v93, %v293
    %295 = vmatprep.mubr.bf16.mxu0 0
    %296 = vmatmul.mubr.bf16.gmra.mrb[0].mxu0 %v118
    %v297 = vpop.f32.mrb[0].mxu0
    %v298 = vadd.f32 %v89, %v297
    %v299 = vpop.f32.mrb[0].mxu0
    %v300 = vadd.f32 %v93, %v299
    %v301 = vpop.f32.mrb[0].mxu0
    %v302 = vadd.f32 %v89, %v301
    %v303 = vpop.f32.mrb[0].mxu0
    %v304 = vadd.f32 %v93, %v303
    %305 = vmatprep.mubr.bf16.mxu0 0
    %306 = vmatmul.mubr.bf16.gmra.mrb[0].mxu0 %v119
    %v307 = vpop.f32.mrb[0].mxu0
    %v308 = vadd.f32 %v89, %v307
    %v309 = vpop.f32.mrb[0].mxu0
    %v310 = vadd.f32 %v93, %v309
    %v311 = vpop.f32.mrb[0].mxu0
    %v312 = vadd.f32 %v89, %v311
    %v313 = vpop.f32.mrb[0].mxu0
    %v314 = vadd.f32 %v93, %v313
    %315 = vmatprep.mubr.bf16.mxu0 0
    %316 = vmatmul.mubr.bf16.gmra.mrb[0].mxu0 %v120
    %v317 = vpop.f32.mrb[0].mxu0
    %v318 = vadd.f32 %v89, %v317
    %v319 = vpop.f32.mrb[0].mxu0
    %v320 = vadd.f32 %v93, %v319
    %v321 = vpop.f32.mrb[0].mxu0
    %v322 = vadd.f32 %v89, %v321
    %v323 = vpop.f32.mrb[0].mxu0
    %v324 = vadd.f32 %v93, %v323
    %325 = vdwg.mxu0
    %326 = vmatprep.subr.bf16.mxu0 0
    %327 = vmatpush1.bf16.msra.mxu0 %v207
    %328 = vmatprep.subr.bf16.mxu0 0
    %329 = vmatpush1.bf16.msra.mxu0 %v210
    %330 = vmatprep.subr.bf16.mxu0 0
    %331 = vmatpush1.bf16.msra.mxu0 %v213
    %332 = vmatprep.subr.bf16.mxu0 0
    %333 = vmatpush1.bf16.msra.mxu0 %v216
    %334 = vmatprep.subr.bf16.mxu0 0
    %335 = vmatpush1.bf16.msra.mxu0 %v219
    %336 = vmatprep.subr.bf16.mxu0 0
    %337 = vmatpush1.bf16.msra.mxu0 %v222
    %338 = vmatprep.subr.bf16.mxu0 0
    %339 = vmatpush1.bf16.msra.mxu0 %v225
    %340 = vmatprep.subr.bf16.mxu0 0
    %341 = vmatpush1.bf16.msra.mxu0 %v228
    %342 = vmatprep.subr.bf16.mxu0 0
    %343 = vmatpush1.bf16.msra.mxu0 0
    %344 = vmatprep.subr.bf16.mxu0 0
    %345 = vmatpush1.bf16.msra.mxu0 0
    %346 = vmatprep.subr.bf16.mxu0 0
    %347 = vmatpush1.bf16.msra.mxu0 0
    %348 = vmatprep.subr.bf16.mxu0 0
    %349 = vmatpush1.bf16.msra.mxu0 0
    %350 = vmatprep.subr.bf16.mxu0 0
    %351 = vmatpush1.bf16.msra.mxu0 0
    %352 = vmatprep.subr.bf16.mxu0 0
    %353 = vmatpush1.bf16.msra.mxu0 0
    %354 = vmatprep.subr.bf16.mxu0 0
    %355 = vmatpush1.bf16.msra.mxu0 0
    %356 = vmatprep.subr.bf16.mxu0 0
    %357 = vmatpush1.bf16.msra.mxu0 0
    %358 = vmatprep.mubr.bf16.mxu0 0
    %359 = vmatmul.mubr.bf16.gmra.mrb[0].mxu0 %v117
    %v360 = vpop.f32.mrb[0].mxu0
    %v361 = vadd.f32 %v97, %v360
    %v362 = vpop.f32.mrb[0].mxu0
    %v363 = vpop.f32.mrb[0].mxu0
    %v364 = vadd.f32 %v97, %v363
    %v365 = vpop.f32.mrb[0].mxu0
    %366 = vmatprep.mubr.bf16.mxu0 0
    %367 = vmatmul.mubr.bf16.gmra.mrb[0].mxu0 %v118
    %v368 = vpop.f32.mrb[0].mxu0
    %v369 = vadd.f32 %v97, %v368
    %v370 = vpop.f32.mrb[0].mxu0
    %v371 = vpop.f32.mrb[0].mxu0
    %v372 = vadd.f32 %v97, %v371
    %v373 = vpop.f32.mrb[0].mxu0
    %374 = vmatprep.mubr.bf16.mxu0 0
    %375 = vmatmul.mubr.bf16.gmra.mrb[0].mxu0 %v119
    %v376 = vpop.f32.mrb[0].mxu0
    %v377 = vadd.f32 %v97, %v376
    %v378 = vpop.f32.mrb[0].mxu0
    %v379 = vpop.f32.mrb[0].mxu0
    %v380 = vadd.f32 %v97, %v379
    %v381 = vpop.f32.mrb[0].mxu0
    %382 = vmatprep.mubr.bf16.mxu0 0
    %383 = vmatmul.mubr.bf16.gmra.mrb[0].mxu0 %v120
    %v384 = vpop.f32.mrb[0].mxu0
    %v385 = vadd.f32 %v97, %v384
    %v386 = vpop.f32.mrb[0].mxu0
    %v387 = vpop.f32.mrb[0].mxu0
    %v388 = vadd.f32 %v97, %v387
    %v389 = vpop.f32.mrb[0].mxu0
    %390 = vdwg.mxu0
    %391 = vst [vmem:[#allocation7] sm:$0xff] %v288
    %392 = vst [vmem:[#allocation7 + $0x8] sm:$0xff] %v290
    %393 = vst [vmem:[#allocation7 + $0x10] sm:$0xff] %v361
    %394 = vst [vmem:[#allocation7 + $0x18] sm:$0xff] %v292
    %395 = vst [vmem:[#allocation7 + $0x20] sm:$0xff] %v294
    %396 = vst [vmem:[#allocation7 + $0x28] sm:$0xff] %v364
    %397 = vst [vmem:[#allocation7 + $0x30] sm:$0xff] %v298
    %398 = vst [vmem:[#allocation7 + $0x38] sm:$0xff] %v300
    %399 = vst [vmem:[#allocation7 + $0x40] sm:$0xff] %v369
    %400 = vst [vmem:[#allocation7 + $0x48] sm:$0xff] %v302
    %401 = vst [vmem:[#allocation7 + $0x50] sm:$0xff] %v304
    %402 = vst [vmem:[#allocation7 + $0x58] sm:$0xff] %v372
    %403 = vst [vmem:[#allocation7 + $0x60] sm:$0xff] %v308
    %404 = vst [vmem:[#allocation7 + $0x68] sm:$0xff] %v310
    %405 = vst [vmem:[#allocation7 + $0x70] sm:$0xff] %v377
    %406 = vst [vmem:[#allocation7 + $0x78] sm:$0xff] %v312
    %407 = vst [vmem:[#allocation7 + $0x80] sm:$0xff] %v314
    %408 = vst [vmem:[#allocation7 + $0x88] sm:$0xff] %v380
    %409 = vst [vmem:[#allocation7 + $0x90] sm:$0xff] %v318
    %410 = vst [vmem:[#allocation7 + $0x98] sm:$0xff] %v320
    %411 = vst [vmem:[#allocation7 + $0xa0] sm:$0xff] %v385
    %412 = vst [vmem:[#allocation7 + $0xa8] sm:$0xff] %v322
    %413 = vst [vmem:[#allocation7 + $0xb0] sm:$0xff] %v324
    %414 = vst [vmem:[#allocation7 + $0xb8] sm:$0xff] %v388
    // Predicated region
    $region22: #{tpu_custom_call.1} parent=1 // pred_check
      _
    $region23: #{tpu_custom_call.1} parent=1 // pred_check_branch
      %416 = sbr.rel (0) target = $region25
    $region24: #{tpu_custom_call.1} parent=1 // pred_region
      %s418 = ssub.s32 3072, 3072
      %419 = vsyncadd [#allocation4], %s418
      %s420 = sshll.u32 [#allocation7], 4
      %s421 = int_to_ptr.vmem [resolvable:$true] %s420
      %426 = dma.vmem_to_hbm [thread:$0]  %s421, 3072, %s3, [#allocation4], 384, 384, 24
    $region25: #{tpu_custom_call.1} parent=1 // pred_fallthru
      _
    // Predicated region
    $region26: #{tpu_custom_call.1} parent=1 // pred_check
      _
    $region27: #{tpu_custom_call.1} parent=1 // pred_check_branch
      %428 = sbr.rel (0) target = $region29
    $region28: #{tpu_custom_call.1} parent=1 // pred_region
      %429 = dma.done [#allocation4], 3072
    $region29: #{tpu_custom_call.1} parent=1 // pred_fallthru
      _
    %430 = vsyncpa [#allocation3], 1
    %431 = vsyncpa [#allocation6], 1
    %432 = vsyncpa [#allocation4], 1

</llo_original>
